<compile_context>
chip_gen: v7x
topology: tpu7x:2x2x1
jax: 0.10.0
libtpu: 0.0.40
codegen_flags: <defaults>
</compile_context>

<pallas_src>
import functools

import jax
import jax.numpy as jnp
from jax.experimental import pallas as pl
from jax.experimental.pallas import tpu as pltpu

IN_OUT_LIST = [[784, 20], [20, 20], [20, 10]]

TM_MAX = 512  # max rows per grid step (see VMEM note above)


def _mlp_kernel(x_ref, w1_ref, w2_ref, w3_ref, o_ref):
    """Fused 3-layer MLP: relu(relu(x@W1)@W2)@W3 for one batch tile."""
    x = x_ref[...]
    cdt = x.dtype  # compute dtype (bf16 by default), accumulation stays f32
    h = jnp.dot(x, w1_ref[...], preferred_element_type=jnp.float32)
    h = jnp.maximum(h, 0.0).astype(cdt)
    h = jnp.dot(h, w2_ref[...], preferred_element_type=jnp.float32)
    h = jnp.maximum(h, 0.0).astype(cdt)
    o_ref[...] = jnp.dot(
        h, w3_ref[...], preferred_element_type=jnp.float32
    ).astype(o_ref.dtype)


@functools.partial(jax.jit, static_argnames=("prunning_set", "compute_dtype"))
def gsp_forward(x, w1, w2, w3, prunning_set=None, compute_dtype=jnp.bfloat16):
    """Forward pass of the `gsp` module.

    x: (N, C, H, W) with H*W == 784 (C assumed 1, as in the PyTorch module).
    Returns (N*C, 10) float32, or (output, prunning_list) if prunning_set is
    given (prunning_set must be a hashable tuple of weight indices).
    """
    feat = x.shape[2] * x.shape[3]          # x.view(-1, H*W)
    x2d = x.reshape(-1, feat)
    n_rows = x2d.shape[0]

    # bf16 compute path: halves the dominant x HBM stream; f32 accumulation
    # is kept inside the kernel.  Pass compute_dtype=jnp.float32 for exact
    # f32 semantics.
    x2d = x2d.astype(compute_dtype)
    w1c = w1.astype(compute_dtype)
    w2c = w2.astype(compute_dtype)
    w3c = w3.astype(compute_dtype)

    # Batch tile: multiple of 16 sublanes (safe for bf16 packing), capped at
    # TM_MAX.  No explicit padding of x: Pallas pads reads / masks writes of
    # the ragged last block, so we never copy the whole batch to round it up.
    tm = min(TM_MAX, ((n_rows + 15) // 16) * 16)
    grid = (pl.cdiv(n_rows, tm),)

    out = pl.pallas_call(
        _mlp_kernel,
        out_shape=jax.ShapeDtypeStruct((n_rows, IN_OUT_LIST[2][1]), jnp.float32),
        grid_spec=pltpu.PrefetchScalarGridSpec(
            num_scalar_prefetch=0,
            grid=grid,
            in_specs=[
                pl.BlockSpec((tm, feat), lambda i: (i, 0)),              # x tile
                pl.BlockSpec(tuple(IN_OUT_LIST[0]), lambda i: (0, 0)),   # W1 (resident)
                pl.BlockSpec(tuple(IN_OUT_LIST[1]), lambda i: (0, 0)),   # W2 (resident)
                pl.BlockSpec(tuple(IN_OUT_LIST[2]), lambda i: (0, 0)),   # W3 (resident)
            ],
            out_specs=pl.BlockSpec((tm, IN_OUT_LIST[2][1]), lambda i: (i, 0)),
        ),
        compiler_params=pltpu.CompilerParams(
            dimension_semantics=("parallel",)
        ),
    )(x2d, w1c, w2c, w3c)

    if prunning_set is not None:
        # Cheap, off the hot path: plain elementwise softmax over dim 0 of the
        # selected (full-precision) weight matrices, exactly as in PyTorch.
        weights = (w1, w2, w3)
        prunning_list = [jax.nn.softmax(weights[i], axis=0) for i in prunning_set]
        return out, prunning_list
    return out


def init_params(key):
    """Deterministic init matching torch.randn(...).normal_(mean=0, std=0.01)."""
    params = []
    for d_in, d_out in IN_OUT_LIST:
        key, sub = jax.random.split(key)
        params.append(0.01 * jax.random.normal(sub, (d_in, d_out), dtype=jnp.float32))
    return params


def _reference(x, w1, w2, w3, compute_dtype=jnp.bfloat16):
    """Plain-JAX reference matching the kernel's bf16-compute / f32-accum path."""
    x2d = x.reshape(-1, x.shape[2] * x.shape[3]).astype(compute_dtype)
    h = jnp.dot(x2d, w1.astype(compute_dtype), preferred_element_type=jnp.float32)
    h = jnp.maximum(h, 0.0).astype(compute_dtype)
    h = jnp.dot(h, w2.astype(compute_dtype), preferred_element_type=jnp.float32)
    h = jnp.maximum(h, 0.0).astype(compute_dtype)
    return jnp.dot(h, w3.astype(compute_dtype), preferred_element_type=jnp.float32)


if __name__ == "__main__":
    key = jax.random.PRNGKey(0)
    key, kx1, kx2 = jax.random.split(key, 3)
    w1, w2, w3 = init_params(key)

    # Small deterministic input consistent with the module: 784 = 28*28, C=1.
    x_small = jax.random.normal(kx1, (2, 1, 28, 28), dtype=jnp.float32)
    out_small = jax.block_until_ready(gsp_forward(x_small, w1, w2, w3))
    ref_small = _reference(x_small, w1, w2, w3)
    assert out_small.shape == (2, 10)
    assert out_small.dtype == jnp.float32
    assert jnp.allclose(out_small, ref_small, atol=1e-5, rtol=5e-3)

    # Larger, non-tile-divisible batch: exercises TM=512 tiling, multiple grid
    # steps and the ragged last block (no input padding copy).
    x_big = jax.random.normal(kx2, (600, 1, 28, 28), dtype=jnp.float32)
    out_big = jax.block_until_ready(gsp_forward(x_big, w1, w2, w3))
    ref_big = _reference(x_big, w1, w2, w3)
    assert out_big.shape == (600, 10)
    assert jnp.allclose(out_big, ref_big, atol=1e-5, rtol=5e-3)

    # prunning_set branch: output plus softmax(dim=0) over selected weights.
    out_p, plist = gsp_forward(x_small, w1, w2, w3, prunning_set=(0, 2))
    jax.block_until_ready(out_p)
    assert len(plist) == 2
    assert plist[0].shape == (784, 20) and plist[1].shape == (20, 10)
    assert jnp.allclose(jnp.sum(plist[1], axis=0), jnp.ones((10,)), atol=1e-5)

    print("KERNEL_OK")
</pallas_src>

<mosaic_0001>
module attributes {stable_mosaic.version = 11 : i64} {
  func.func @_mlp_kernel(%arg0: i32, %arg1: memref<16x784xbf16, #tpu.memory_space<vmem>>, %arg2: memref<784x20xbf16, #tpu.memory_space<vmem>>, %arg3: memref<20x20xbf16, #tpu.memory_space<vmem>>, %arg4: memref<20x10xbf16, #tpu.memory_space<vmem>>, %arg5: memref<16x10xf32, #tpu.memory_space<vmem>>) attributes {dimension_semantics = [#tpu.dimension_semantics<parallel>], iteration_bounds = array<i64: 1>, scalar_prefetch = 0 : i64, scratch_operands = 0 : i64, tpu.core_type = #tpu.core_type<tc>, window_params = [{transform_indices = @transform_0, window_bounds = array<i64: 16, 784>}, {pipeline_mode = #tpu.pipeline_mode<synchronous>, transform_indices = @transform_1, window_bounds = array<i64: 784, 20>}, {pipeline_mode = #tpu.pipeline_mode<synchronous>, transform_indices = @transform_2, window_bounds = array<i64: 20, 20>}, {pipeline_mode = #tpu.pipeline_mode<synchronous>, transform_indices = @transform_3, window_bounds = array<i64: 20, 10>}, {transform_indices = @transform_4, window_bounds = array<i64: 16, 10>}]} {
    %c0 = arith.constant 0 : index
    %c0_0 = arith.constant 0 : index
    %0 = vector.load %arg1[%c0, %c0_0] : memref<16x784xbf16, #tpu.memory_space<vmem>>, vector<16x784xbf16>
    %c0_1 = arith.constant 0 : index
    %c0_2 = arith.constant 0 : index
    %1 = vector.load %arg2[%c0_1, %c0_2] : memref<784x20xbf16, #tpu.memory_space<vmem>>, vector<784x20xbf16>
    %cst = arith.constant dense<0.000000e+00> : vector<16x20xf32>
    %2 = tpu.matmul %0, %1, %cst {dimension_numbers = #tpu.dot_dimension_numbers<[1], [0], [0], [1], [0, 0, 1, 1], [], []>} : vector<16x784xbf16>, vector<784x20xbf16>, vector<16x20xf32> -> vector<16x20xf32>
    %cst_3 = arith.constant 0.000000e+00 : f32
    %3 = vector.broadcast %cst_3 : f32 to vector<16x20xf32>
    %4 = arith.maximumf %2, %3 : vector<16x20xf32>
    %5 = arith.truncf %4 : vector<16x20xf32> to vector<16x20xbf16>
    %c0_4 = arith.constant 0 : index
    %c0_5 = arith.constant 0 : index
    %6 = vector.load %arg3[%c0_4, %c0_5] : memref<20x20xbf16, #tpu.memory_space<vmem>>, vector<20x20xbf16>
    %cst_6 = arith.constant dense<0.000000e+00> : vector<16x20xf32>
    %7 = tpu.matmul %5, %6, %cst_6 {dimension_numbers = #tpu.dot_dimension_numbers<[1], [0], [0], [1], [0, 0, 1, 1], [], []>} : vector<16x20xbf16>, vector<20x20xbf16>, vector<16x20xf32> -> vector<16x20xf32>
    %cst_7 = arith.constant 0.000000e+00 : f32
    %8 = vector.broadcast %cst_7 : f32 to vector<16x20xf32>
    %9 = arith.maximumf %7, %8 : vector<16x20xf32>
    %10 = arith.truncf %9 : vector<16x20xf32> to vector<16x20xbf16>
    %c0_8 = arith.constant 0 : index
    %c0_9 = arith.constant 0 : index
    %11 = vector.load %arg4[%c0_8, %c0_9] : memref<20x10xbf16, #tpu.memory_space<vmem>>, vector<20x10xbf16>
    %cst_10 = arith.constant dense<0.000000e+00> : vector<16x10xf32>
    %12 = tpu.matmul %10, %11, %cst_10 {dimension_numbers = #tpu.dot_dimension_numbers<[1], [0], [0], [1], [0, 0, 1, 1], [], []>} : vector<16x20xbf16>, vector<20x10xbf16>, vector<16x10xf32> -> vector<16x10xf32>
    %c0_11 = arith.constant 0 : index
    %c0_12 = arith.constant 0 : index
    %13 = vector.load %arg5[%c0_11, %c0_12] : memref<16x10xf32, #tpu.memory_space<vmem>>, vector<16x10xf32>
    tpu.vector_store %arg5[%c0_11, %c0_12], %12 {strides = array<i32>} : memref<16x10xf32, #tpu.memory_space<vmem>>, vector<16x10xf32>,
    return
  }
  func.func @transform_0(%arg0: i32) -> (i32, i32) {
    %c0_i32 = arith.constant 0 : i32
    %c0_i32_0 = arith.constant 0 : i32
    return %arg0, %c0_i32 : i32, i32
  }
  func.func @transform_1(%arg0: i32) -> (i32, i32) {
    %c0_i32 = arith.constant 0 : i32
    %c0_i32_0 = arith.constant 0 : i32
    %c0_i32_1 = arith.constant 0 : i32
    return %c0_i32, %c0_i32_0 : i32, i32
  }
  func.func @transform_2(%arg0: i32) -> (i32, i32) {
    %c0_i32 = arith.constant 0 : i32
    %c0_i32_0 = arith.constant 0 : i32
    %c0_i32_1 = arith.constant 0 : i32
    return %c0_i32, %c0_i32_0 : i32, i32
  }
  func.func @transform_3(%arg0: i32) -> (i32, i32) {
    %c0_i32 = arith.constant 0 : i32
    %c0_i32_0 = arith.constant 0 : i32
    %c0_i32_1 = arith.constant 0 : i32
    return %c0_i32, %c0_i32_0 : i32, i32
  }
  func.func @transform_4(%arg0: i32) -> (i32, i32) {
    %c0_i32 = arith.constant 0 : i32
    %c0_i32_0 = arith.constant 0 : i32
    return %arg0, %c0_i32 : i32, i32
  }
}

</mosaic_0001>

<llo_original>
// kernel: gsp_forward.1
$region0: #{gsp_forward.1}
  #allocation0 [shape = 'u32[]', space=smem, size = 0x4, offset = 0x4, fixed_abs, tag = 'smem constant byte address 0x4 - core index']
  #allocation1 [shape = 'u32[144,128]{1,0:T(1,128)}', space=vmem, size = 0x12000, scoped, tag = 'internal scratch']
  %s0 = inlined_call_operand.vmem [shape: bf16[2,784], index: 0, kind: input, shape index: {}]
  %s1 = inlined_call_operand.vmem [shape: bf16[784,20], index: 1, kind: input, shape index: {}]
  %s2 = inlined_call_operand.vmem [shape: bf16[20,20], index: 2, kind: input, shape index: {}]
  %s3 = inlined_call_operand.vmem [shape: bf16[20,10], index: 3, kind: input, shape index: {}]
  %s4 = inlined_call_operand.hbm [shape: f32[2,10], index: 4, kind: output, shape index: {}]
  %s5 = sld [smem:[#allocation0]]
  $region26: #{gsp_forward.1} parent=0
    _
  %s7 = ssub.s32 1, %s5
  %s8 = scalar_select 0, %s7, %s5
  $region1: #{gsp_forward.1} parent=0
    #allocation2 [shape = 'u8[8192]{0}', space=vmem, size = 0x2000, scoped, tag = 'output window, operand 0, single buffered']
    #allocation3 [shape = 's32[1]{0}', space=sflag, size = 0x4, scoped, tag = 'scoped memory for gsp_forward.1']
    %9 = vsyncpa [#allocation3], 0
    // Predicated region
    $region2: #{gsp_forward.1} parent=1 // pred_check
      _
    $region3: #{gsp_forward.1} parent=1 // pred_check_branch
      %11 = sbr.rel (0) target = $region5
    $region4: #{gsp_forward.1} parent=1 // pred_region
      _
    $region5: #{gsp_forward.1} parent=1 // pred_fallthru
      _
    // Predicated region
    $region6: #{gsp_forward.1} parent=1 // pred_check
      _
    $region7: #{gsp_forward.1} parent=1 // pred_check_branch
      %13 = sbr.rel (0) target = $region9
    $region8: #{gsp_forward.1} parent=1 // pred_region
      _
    $region9: #{gsp_forward.1} parent=1 // pred_fallthru
      _
    // Predicated region
    $region10: #{gsp_forward.1} parent=1 // pred_check
      _
    $region11: #{gsp_forward.1} parent=1 // pred_check_branch
      %15 = sbr.rel (0) target = $region13
    $region12: #{gsp_forward.1} parent=1 // pred_region
      _
    $region13: #{gsp_forward.1} parent=1 // pred_fallthru
      _
    // Predicated region
    $region14: #{gsp_forward.1} parent=1 // pred_check
      _
    $region15: #{gsp_forward.1} parent=1 // pred_check_branch
      %17 = sbr.rel (0) target = $region17
    $region16: #{gsp_forward.1} parent=1 // pred_region
      _
    $region17: #{gsp_forward.1} parent=1 // pred_fallthru
      _
    %v19 = vld [vmem:[%s0] sm:$0x7f]
    %v20 = vld [vmem:[%s0 + $0x7] sm:$0x7f]
    %v21 = vld [vmem:[%s0 + $0xe] sm:$0x7f]
    %v22 = vld [vmem:[%s0 + $0x15] sm:$0x7f]
    %v23 = vld [vmem:[%s0 + $0x1c] sm:$0x7f]
    %v24 = vld [vmem:[%s0 + $0x23] sm:$0x7f]
    %v25 = vld [vmem:[%s0 + $0x2a] sm:$0x7f]
    %v26 = vld [vmem:[%s0 + $0x31] sm:$0x7f]
    %v27 = vld [vmem:[%s1] sm:$0xf]
    %v28 = vld [vmem:[%s1 + $0x4] sm:$0xf]
    %v29 = vld [vmem:[%s1 + $0x8] sm:$0xf]
    %v30 = vld [vmem:[%s1 + $0xc] sm:$0xf]
    %v31 = vld [vmem:[%s1 + $0x10] sm:$0xf]
    %v32 = vld [vmem:[%s1 + $0x14] sm:$0xf]
    %v33 = vld [vmem:[%s1 + $0x18] sm:$0xf]
    %v34 = vld [vmem:[%s1 + $0x1c] sm:$0xf]
    %v35 = vld [vmem:[%s1 + $0x20] sm:$0xf]
    %v36 = vld [vmem:[%s1 + $0x24] sm:$0xf]
    %v37 = vld [vmem:[%s1 + $0x28] sm:$0xf]
    %v38 = vld [vmem:[%s1 + $0x2c] sm:$0xf]
    %v39 = vld [vmem:[%s1 + $0x30] sm:$0xf]
    %v40 = vld [vmem:[%s1 + $0x34] sm:$0xf]
    %v41 = vld [vmem:[%s1 + $0x38] sm:$0xf]
    %v42 = vld [vmem:[%s1 + $0x3c] sm:$0xf]
    %v43 = vld [vmem:[%s1 + $0x40] sm:$0xf]
    %v44 = vld [vmem:[%s1 + $0x44] sm:$0xf]
    %v45 = vld [vmem:[%s1 + $0x48] sm:$0xf]
    %v46 = vld [vmem:[%s1 + $0x4c] sm:$0xf]
    %v47 = vld [vmem:[%s1 + $0x50] sm:$0xf]
    %v48 = vld [vmem:[%s1 + $0x54] sm:$0xf]
    %v49 = vld [vmem:[%s1 + $0x58] sm:$0xf]
    %v50 = vld [vmem:[%s1 + $0x5c] sm:$0xf]
    %v51 = vld [vmem:[%s1 + $0x60] sm:$0xf]
    %v52 = vld [vmem:[%s1 + $0x64] sm:$0xf]
    %v53 = vld [vmem:[%s1 + $0x68] sm:$0xf]
    %v54 = vld [vmem:[%s1 + $0x6c] sm:$0xf]
    %v55 = vld [vmem:[%s1 + $0x70] sm:$0xf]
    %v56 = vld [vmem:[%s1 + $0x74] sm:$0xf]
    %v57 = vld [vmem:[%s1 + $0x78] sm:$0xf]
    %v58 = vld [vmem:[%s1 + $0x7c] sm:$0xf]
    %v59 = vld [vmem:[%s1 + $0x80] sm:$0xf]
    %v60 = vld [vmem:[%s1 + $0x84] sm:$0xf]
    %v61 = vld [vmem:[%s1 + $0x88] sm:$0xf]
    %v62 = vld [vmem:[%s1 + $0x8c] sm:$0xf]
    %v63 = vld [vmem:[%s1 + $0x90] sm:$0xf]
    %v64 = vld [vmem:[%s1 + $0x94] sm:$0xf]
    %v65 = vld [vmem:[%s1 + $0x98] sm:$0xf]
    %v66 = vld [vmem:[%s1 + $0x9c] sm:$0xf]
    %v67 = vld [vmem:[%s1 + $0xa0] sm:$0xf]
    %v68 = vld [vmem:[%s1 + $0xa4] sm:$0xf]
    %v69 = vld [vmem:[%s1 + $0xa8] sm:$0xf]
    %v70 = vld [vmem:[%s1 + $0xac] sm:$0xf]
    %v71 = vld [vmem:[%s1 + $0xb0] sm:$0xf]
    %v72 = vld [vmem:[%s1 + $0xb4] sm:$0xf]
    %v73 = vld [vmem:[%s1 + $0xb8] sm:$0xf]
    %v74 = vld [vmem:[%s1 + $0xbc] sm:$0xf]
    %v75 = vld [vmem:[%s1 + $0xc0] sm:$0xf]
    %v76 = vld [vmem:[%s1 + $0xc4] sm:$0xf]
    %v77 = vld [vmem:[%s1 + $0xc8] sm:$0xf]
    %v78 = vld [vmem:[%s1 + $0xcc] sm:$0xf]
    %v79 = vld [vmem:[%s1 + $0xd0] sm:$0xf]
    %v80 = vld [vmem:[%s1 + $0xd4] sm:$0xf]
    %v81 = vld [vmem:[%s1 + $0xd8] sm:$0xf]
    %v82 = vld [vmem:[%s1 + $0xdc] sm:$0xf]
    %v83 = vld [vmem:[%s1 + $0xe0] sm:$0xf]
    %v84 = vld [vmem:[%s1 + $0xe4] sm:$0xf]
    %v85 = vld [vmem:[%s1 + $0xe8] sm:$0xf]
    %v86 = vld [vmem:[%s1 + $0xec] sm:$0xf]
    %v87 = vld [vmem:[%s1 + $0xf0] sm:$0xf]
    %v88 = vld [vmem:[%s1 + $0xf4] sm:$0xf]
    %v89 = vld [vmem:[%s1 + $0xf8] sm:$0xf]
    %v90 = vld [vmem:[%s1 + $0xfc] sm:$0xf]
    %v91 = vld [vmem:[%s1 + $0x100] sm:$0xf]
    %v92 = vld [vmem:[%s1 + $0x104] sm:$0xf]
    %v93 = vld [vmem:[%s1 + $0x108] sm:$0xf]
    %v94 = vld [vmem:[%s1 + $0x10c] sm:$0xf]
    %v95 = vld [vmem:[%s1 + $0x110] sm:$0xf]
    %v96 = vld [vmem:[%s1 + $0x114] sm:$0xf]
    %v97 = vld [vmem:[%s1 + $0x118] sm:$0xf]
    %v98 = vld [vmem:[%s1 + $0x11c] sm:$0xf]
    %v99 = vld [vmem:[%s1 + $0x120] sm:$0xf]
    %v100 = vld [vmem:[%s1 + $0x124] sm:$0xf]
    %v101 = vld [vmem:[%s1 + $0x128] sm:$0xf]
    %v102 = vld [vmem:[%s1 + $0x12c] sm:$0xf]
    %v103 = vld [vmem:[%s1 + $0x130] sm:$0xf]
    %v104 = vld [vmem:[%s1 + $0x134] sm:$0xf]
    %v105 = vld [vmem:[%s1 + $0x138] sm:$0xf]
    %v106 = vld [vmem:[%s1 + $0x13c] sm:$0xf]
    %v107 = vld [vmem:[%s1 + $0x140] sm:$0xf]
    %v108 = vld [vmem:[%s1 + $0x144] sm:$0xf]
    %v109 = vld [vmem:[%s1 + $0x148] sm:$0xf]
    %v110 = vld [vmem:[%s1 + $0x14c] sm:$0xf]
    %v111 = vld [vmem:[%s1 + $0x150] sm:$0xf]
    %v112 = vld [vmem:[%s1 + $0x154] sm:$0xf]
    %v113 = vld [vmem:[%s1 + $0x158] sm:$0xf]
    %v114 = vld [vmem:[%s1 + $0x15c] sm:$0xf]
    %v115 = vld [vmem:[%s1 + $0x160] sm:$0xf]
    %v116 = vld [vmem:[%s1 + $0x164] sm:$0xf]
    %v117 = vld [vmem:[%s1 + $0x168] sm:$0xf]
    %v118 = vld [vmem:[%s1 + $0x16c] sm:$0xf]
    %v119 = vld [vmem:[%s1 + $0x170] sm:$0xf]
    %v120 = vld [vmem:[%s1 + $0x174] sm:$0xf]
    %v121 = vld [vmem:[%s1 + $0x178] sm:$0xf]
    %v122 = vld [vmem:[%s1 + $0x17c] sm:$0xf]
    %v123 = vld [vmem:[%s1 + $0x180] sm:$0xf]
    %v124 = vld [vmem:[%s1 + $0x184] sm:$0xf]
    %v133 = vcombine.low %v19, %v20
    %v134 = vcombine.high %v19, %v20
    %v135 = vcombine.low %v21, %v22
    %v136 = vcombine.high %v21, %v22
    %v137 = vcombine.low %v23, %v24
    %v138 = vcombine.high %v23, %v24
    %v139 = vcombine.low %v25, %v26
    %v140 = vcombine.high %v25, %v26
    %v142 = vunpack.c.l.s4 1966171168
    %v143 = vunpack.c.0.s8 %v142
    %v144 = vlaneseq
    %v145 = vshrl.u32 %v144, 7
    %v146 = vsub.s32 %v143, %v145
    %v147 = vrot.slane %v133, %v146
    %v149 = vunpack.c.l.s4 1966171168
    %v150 = vunpack.c.0.s8 %v149
    %v151 = vlaneseq
    %v152 = vshrl.u32 %v151, 7
    %v153 = vsub.s32 %v150, %v152
    %v154 = vrot.slane %v134, %v153
    %v156 = vunpack.c.l.s4 1966171168
    %v157 = vunpack.c.0.s8 %v156
    %v158 = vlaneseq
    %v159 = vshrl.u32 %v158, 7
    %v160 = vsub.s32 %v157, %v159
    %v161 = vrot.slane %v135, %v160
    %v163 = vunpack.c.l.s4 1966171168
    %v164 = vunpack.c.0.s8 %v163
    %v165 = vlaneseq
    %v166 = vshrl.u32 %v165, 7
    %v167 = vsub.s32 %v164, %v166
    %v168 = vrot.slane %v136, %v167
    %v170 = vunpack.c.l.s4 1966171168
    %v171 = vunpack.c.0.s8 %v170
    %v172 = vlaneseq
    %v173 = vshrl.u32 %v172, 7
    %v174 = vsub.s32 %v171, %v173
    %v175 = vrot.slane %v137, %v174
    %v177 = vunpack.c.l.s4 1966171168
    %v178 = vunpack.c.0.s8 %v177
    %v179 = vlaneseq
    %v180 = vshrl.u32 %v179, 7
    %v181 = vsub.s32 %v178, %v180
    %v182 = vrot.slane %v138, %v181
    %v184 = vunpack.c.l.s4 1966171168
    %v185 = vunpack.c.0.s8 %v184
    %v186 = vlaneseq
    %v187 = vshrl.u32 %v186, 7
    %v188 = vsub.s32 %v185, %v187
    %v189 = vrot.slane %v139, %v188
    %v191 = vunpack.c.l.s4 1966171168
    %v192 = vunpack.c.0.s8 %v191
    %v193 = vlaneseq
    %v194 = vshrl.u32 %v193, 7
    %v195 = vsub.s32 %v192, %v194
    %v196 = vrot.slane %v140, %v195
    %v197 = vcombine.low %v147, %v161
    %v198 = vcombine.high %v147, %v161
    %v199 = vcombine.low %v154, %v168
    %v200 = vcombine.high %v154, %v168
    %v201 = vcombine.low %v175, %v189
    %v202 = vcombine.high %v175, %v189
    %v203 = vcombine.low %v182, %v196
    %v204 = vcombine.high %v182, %v196
    %v206 = vunpack.c.l.s4 1966171168
    %v207 = vunpack.c.0.s8 %v206
    %v208 = vlaneseq
    %v209 = vshrl.u32 %v208, 7
    %v210 = vsub.s32 %v207, %v209
    %v211 = vrot.slane %v197, %v210
    %v213 = vunpack.c.l.s4 1966171168
    %v214 = vunpack.c.0.s8 %v213
    %v215 = vlaneseq
    %v216 = vshrl.u32 %v215, 7
    %v217 = vsub.s32 %v214, %v216
    %v218 = vrot.slane %v199, %v217
    %v220 = vunpack.c.l.s4 1966171168
    %v221 = vunpack.c.0.s8 %v220
    %v222 = vlaneseq
    %v223 = vshrl.u32 %v222, 7
    %v224 = vsub.s32 %v221, %v223
    %v225 = vrot.slane %v198, %v224
    %v227 = vunpack.c.l.s4 1966171168
    %v228 = vunpack.c.0.s8 %v227
    %v229 = vlaneseq
    %v230 = vshrl.u32 %v229, 7
    %v231 = vsub.s32 %v228, %v230
    %v232 = vrot.slane %v200, %v231
    %v234 = vunpack.c.l.s4 1966171168
    %v235 = vunpack.c.0.s8 %v234
    %v236 = vlaneseq
    %v237 = vshrl.u32 %v236, 7
    %v238 = vsub.s32 %v235, %v237
    %v239 = vrot.slane %v201, %v238
    %v241 = vunpack.c.l.s4 1966171168
    %v242 = vunpack.c.0.s8 %v241
    %v243 = vlaneseq
    %v244 = vshrl.u32 %v243, 7
    %v245 = vsub.s32 %v242, %v244
    %v246 = vrot.slane %v203, %v245
    %v248 = vunpack.c.l.s4 1966171168
    %v249 = vunpack.c.0.s8 %v248
    %v250 = vlaneseq
    %v251 = vshrl.u32 %v250, 7
    %v252 = vsub.s32 %v249, %v251
    %v253 = vrot.slane %v202, %v252
    %v255 = vunpack.c.l.s4 1966171168
    %v256 = vunpack.c.0.s8 %v255
    %v257 = vlaneseq
    %v258 = vshrl.u32 %v257, 7
    %v259 = vsub.s32 %v256, %v258
    %v260 = vrot.slane %v204, %v259
    %v261 = vcombine.low %v211, %v239
    %v262 = vcombine.high %v211, %v239
    %v263 = vcombine.low %v218, %v246
    %v264 = vcombine.high %v218, %v246
    %v265 = vcombine.low %v225, %v253
    %v266 = vcombine.high %v225, %v253
    %v267 = vcombine.low %v232, %v260
    %v372 = vunpack.c.l.b16 %v27
    %v373 = vunpack.c.l.b16 %v28
    %v374 = vunpack.c.l.b16 %v29
    %v375 = vunpack.c.l.b16 %v30
    %v376 = vunpack.c.l.b16 %v31
    %v377 = vunpack.c.l.b16 %v32
    %v378 = vunpack.c.l.b16 %v33
    %v379 = vunpack.c.l.b16 %v34
    %v380 = vunpack.c.l.b16 %v35
    %v381 = vunpack.c.l.b16 %v36
    %v382 = vunpack.c.l.b16 %v37
    %v383 = vunpack.c.l.b16 %v38
    %v384 = vunpack.c.l.b16 %v39
    %v385 = vunpack.c.l.b16 %v40
    %v386 = vunpack.c.l.b16 %v41
    %v387 = vunpack.c.l.b16 %v42
    %v388 = vunpack.c.l.b16 %v43
    %v389 = vunpack.c.l.b16 %v44
    %v390 = vunpack.c.l.b16 %v45
    %v391 = vunpack.c.l.b16 %v46
    %v392 = vunpack.c.l.b16 %v47
    %v393 = vunpack.c.l.b16 %v48
    %v394 = vunpack.c.l.b16 %v49
    %v395 = vunpack.c.l.b16 %v50
    %v396 = vunpack.c.l.b16 %v51
    %v397 = vunpack.c.l.b16 %v52
    %v398 = vunpack.c.l.b16 %v53
    %v399 = vunpack.c.l.b16 %v54
    %v400 = vunpack.c.l.b16 %v55
    %v401 = vunpack.c.l.b16 %v56
    %v402 = vunpack.c.l.b16 %v57
    %v403 = vunpack.c.l.b16 %v58
    %v404 = vunpack.c.l.b16 %v59
    %v405 = vunpack.c.l.b16 %v60
    %v406 = vunpack.c.l.b16 %v61
    %v407 = vunpack.c.l.b16 %v62
    %v408 = vunpack.c.l.b16 %v63
    %v409 = vunpack.c.l.b16 %v64
    %v410 = vunpack.c.l.b16 %v65
    %v411 = vunpack.c.l.b16 %v66
    %v412 = vunpack.c.l.b16 %v67
    %v413 = vunpack.c.l.b16 %v68
    %v414 = vunpack.c.l.b16 %v69
    %v415 = vunpack.c.l.b16 %v70
    %v416 = vunpack.c.l.b16 %v71
    %v417 = vunpack.c.l.b16 %v72
    %v418 = vunpack.c.l.b16 %v73
    %v419 = vunpack.c.l.b16 %v74
    %v420 = vunpack.c.l.b16 %v75
    %v421 = vunpack.c.l.b16 %v76
    %v422 = vunpack.c.l.b16 %v77
    %v423 = vunpack.c.l.b16 %v78
    %v424 = vunpack.c.l.b16 %v79
    %v425 = vunpack.c.l.b16 %v80
    %v426 = vunpack.c.l.b16 %v81
    %v427 = vunpack.c.l.b16 %v82
    %v428 = vunpack.c.l.b16 %v83
    %v429 = vunpack.c.l.b16 %v84
    %v430 = vunpack.c.l.b16 %v85
    %v431 = vunpack.c.l.b16 %v86
    %v432 = vunpack.c.l.b16 %v87
    %v433 = vunpack.c.l.b16 %v88
    %v434 = vunpack.c.l.b16 %v89
    %v435 = vunpack.c.l.b16 %v90
    %v436 = vunpack.c.l.b16 %v91
    %v437 = vunpack.c.l.b16 %v92
    %v438 = vunpack.c.l.b16 %v93
    %v439 = vunpack.c.l.b16 %v94
    %v440 = vunpack.c.l.b16 %v95
    %v441 = vunpack.c.l.b16 %v96
    %v442 = vunpack.c.l.b16 %v97
    %v443 = vunpack.c.l.b16 %v98
    %v444 = vunpack.c.l.b16 %v99
    %v445 = vunpack.c.l.b16 %v100
    %v446 = vunpack.c.l.b16 %v101
    %v447 = vunpack.c.l.b16 %v102
    %v448 = vunpack.c.l.b16 %v103
    %v449 = vunpack.c.l.b16 %v104
    %v450 = vunpack.c.l.b16 %v105
    %v451 = vunpack.c.l.b16 %v106
    %v452 = vunpack.c.l.b16 %v107
    %v453 = vunpack.c.l.b16 %v108
    %v454 = vunpack.c.l.b16 %v109
    %v455 = vunpack.c.l.b16 %v110
    %v456 = vunpack.c.l.b16 %v111
    %v457 = vunpack.c.l.b16 %v112
    %v458 = vunpack.c.l.b16 %v113
    %v459 = vunpack.c.l.b16 %v114
    %v460 = vunpack.c.l.b16 %v115
    %v461 = vunpack.c.l.b16 %v116
    %v462 = vunpack.c.l.b16 %v117
    %v463 = vunpack.c.l.b16 %v118
    %v464 = vunpack.c.l.b16 %v119
    %v465 = vunpack.c.l.b16 %v120
    %v466 = vunpack.c.l.b16 %v121
    %v467 = vunpack.c.l.b16 %v122
    %v468 = vunpack.c.l.b16 %v123
    %v469 = vunpack.c.l.b16 %v124
    %v470 = vpack.c.b16 %v373, %v372
    %v471 = vpack.c.b16 %v375, %v374
    %v472 = vpack.c.b16 %v377, %v376
    %v473 = vpack.c.b16 %v379, %v378
    %v474 = vpack.c.b16 %v381, %v380
    %v475 = vpack.c.b16 %v383, %v382
    %v476 = vpack.c.b16 %v385, %v384
    %v477 = vpack.c.b16 %v387, %v386
    %v478 = vpack.c.b16 %v389, %v388
    %v479 = vpack.c.b16 %v391, %v390
    %v480 = vpack.c.b16 %v393, %v392
    %v481 = vpack.c.b16 %v395, %v394
    %v482 = vpack.c.b16 %v397, %v396
    %v483 = vpack.c.b16 %v399, %v398
    %v484 = vpack.c.b16 %v401, %v400
    %v485 = vpack.c.b16 %v403, %v402
    %v486 = vpack.c.b16 %v405, %v404
    %v487 = vpack.c.b16 %v407, %v406
    %v488 = vpack.c.b16 %v409, %v408
    %v489 = vpack.c.b16 %v411, %v410
    %v490 = vpack.c.b16 %v413, %v412
    %v491 = vpack.c.b16 %v415, %v414
    %v492 = vpack.c.b16 %v417, %v416
    %v493 = vpack.c.b16 %v419, %v418
    %v494 = vpack.c.b16 %v421, %v420
    %v495 = vpack.c.b16 %v423, %v422
    %v496 = vpack.c.b16 %v425, %v424
    %v497 = vpack.c.b16 %v427, %v426
    %v498 = vpack.c.b16 %v429, %v428
    %v499 = vpack.c.b16 %v431, %v430
    %v500 = vpack.c.b16 %v433, %v432
    %v501 = vpack.c.b16 %v435, %v434
    %v502 = vpack.c.b16 %v437, %v436
    %v503 = vpack.c.b16 %v439, %v438
    %v504 = vpack.c.b16 %v441, %v440
    %v505 = vpack.c.b16 %v443, %v442
    %v506 = vpack.c.b16 %v445, %v444
    %v507 = vpack.c.b16 %v447, %v446
    %v508 = vpack.c.b16 %v449, %v448
    %v509 = vpack.c.b16 %v451, %v450
    %v510 = vpack.c.b16 %v453, %v452
    %v511 = vpack.c.b16 %v455, %v454
    %v512 = vpack.c.b16 %v457, %v456
    %v513 = vpack.c.b16 %v459, %v458
    %v514 = vpack.c.b16 %v461, %v460
    %v515 = vpack.c.b16 %v463, %v462
    %v516 = vpack.c.b16 %v465, %v464
    %v517 = vpack.c.b16 %v467, %v466
    %v518 = vpack.c.b16 %v469, %v468
    %vm568 = vcmask 130048
    %v570 = vsel %vm568, %v264, 0
    %572 = vmatprep.subr.bf16.mxu0 0
    %573 = vmatpush1.bf16.msra.mxu0 %v470
    %574 = vmatprep.subr.bf16.mxu0 0
    %575 = vmatpush1.bf16.msra.mxu0 %v471
    %576 = vmatprep.subr.bf16.mxu0 0
    %577 = vmatpush1.bf16.msra.mxu0 %v472
    %578 = vmatprep.subr.bf16.mxu0 0
    %579 = vmatpush1.bf16.msra.mxu0 %v473
    %580 = vmatprep.subr.bf16.mxu0 0
    %581 = vmatpush1.bf16.msra.mxu0 %v474
    %582 = vmatprep.subr.bf16.mxu0 0
    %583 = vmatpush1.bf16.msra.mxu0 %v475
    %584 = vmatprep.subr.bf16.mxu0 0
    %585 = vmatpush1.bf16.msra.mxu0 %v476
    %586 = vmatprep.subr.bf16.mxu0 0
    %587 = vmatpush1.bf16.msra.mxu0 %v477
    %588 = vmatprep.subr.bf16.mxu0 0
    %589 = vmatpush1.bf16.msra.mxu0 %v478
    %590 = vmatprep.subr.bf16.mxu0 0
    %591 = vmatpush1.bf16.msra.mxu0 %v479
    %592 = vmatprep.subr.bf16.mxu0 0
    %593 = vmatpush1.bf16.msra.mxu0 %v480
    %594 = vmatprep.subr.bf16.mxu0 0
    %595 = vmatpush1.bf16.msra.mxu0 %v481
    %596 = vmatprep.subr.bf16.mxu0 0
    %597 = vmatpush1.bf16.msra.mxu0 %v482
    %598 = vmatprep.subr.bf16.mxu0 0
    %599 = vmatpush1.bf16.msra.mxu0 %v483
    %600 = vmatprep.subr.bf16.mxu0 0
    %601 = vmatpush1.bf16.msra.mxu0 %v484
    %602 = vmatprep.subr.bf16.mxu0 0
    %603 = vmatpush1.bf16.msra.mxu0 %v485
    %604 = vmatprep.mubr.bf16.mxu0 %v265
    %605 = vmatmul.mubr.bf16.gmra.mrb[0].mxu0 %v261
    %v606 = vpop.f32.mrb[0].mxu0
    %v607 = vadd.f32 0.0, %v606
    %v608 = vpop.f32.mrb[0].mxu0
    %v609 = vpop.f32.mrb[0].mxu0
    %v610 = vadd.f32 0.0, %v609
    %v611 = vpop.f32.mrb[0].mxu0
    %612 = vdwg.mxu0
    %613 = vmatprep.subr.bf16.mxu0 0
    %614 = vmatpush1.bf16.msra.mxu0 %v486
    %615 = vmatprep.subr.bf16.mxu0 0
    %616 = vmatpush1.bf16.msra.mxu0 %v487
    %617 = vmatprep.subr.bf16.mxu0 0
    %618 = vmatpush1.bf16.msra.mxu0 %v488
    %619 = vmatprep.subr.bf16.mxu0 0
    %620 = vmatpush1.bf16.msra.mxu0 %v489
    %621 = vmatprep.subr.bf16.mxu0 0
    %622 = vmatpush1.bf16.msra.mxu0 %v490
    %623 = vmatprep.subr.bf16.mxu0 0
    %624 = vmatpush1.bf16.msra.mxu0 %v491
    %625 = vmatprep.subr.bf16.mxu0 0
    %626 = vmatpush1.bf16.msra.mxu0 %v492
    %627 = vmatprep.subr.bf16.mxu0 0
    %628 = vmatpush1.bf16.msra.mxu0 %v493
    %629 = vmatprep.subr.bf16.mxu0 0
    %630 = vmatpush1.bf16.msra.mxu0 %v494
    %631 = vmatprep.subr.bf16.mxu0 0
    %632 = vmatpush1.bf16.msra.mxu0 %v495
    %633 = vmatprep.subr.bf16.mxu0 0
    %634 = vmatpush1.bf16.msra.mxu0 %v496
    %635 = vmatprep.subr.bf16.mxu0 0
    %636 = vmatpush1.bf16.msra.mxu0 %v497
    %637 = vmatprep.subr.bf16.mxu0 0
    %638 = vmatpush1.bf16.msra.mxu0 %v498
    %639 = vmatprep.subr.bf16.mxu0 0
    %640 = vmatpush1.bf16.msra.mxu0 %v499
    %641 = vmatprep.subr.bf16.mxu0 0
    %642 = vmatpush1.bf16.msra.mxu0 %v500
    %643 = vmatprep.subr.bf16.mxu0 0
    %644 = vmatpush1.bf16.msra.mxu0 %v501
    %645 = vmatprep.mubr.bf16.mxu0 %v266
    %646 = vmatmul.mubr.bf16.gmra.mrb[0].mxu0 %v262
    %v647 = vpop.f32.mrb[0].mxu0
    %v648 = vadd.f32 %v607, %v647
    %v649 = vpop.f32.mrb[0].mxu0
    %v650 = vpop.f32.mrb[0].mxu0
    %v651 = vadd.f32 %v610, %v650
    %v652 = vpop.f32.mrb[0].mxu0
    %653 = vdwg.mxu0
    %654 = vmatprep.subr.bf16.mxu0 0
    %655 = vmatpush1.bf16.msra.mxu0 %v502
    %656 = vmatprep.subr.bf16.mxu0 0
    %657 = vmatpush1.bf16.msra.mxu0 %v503
    %658 = vmatprep.subr.bf16.mxu0 0
    %659 = vmatpush1.bf16.msra.mxu0 %v504
    %660 = vmatprep.subr.bf16.mxu0 0
    %661 = vmatpush1.bf16.msra.mxu0 %v505
    %662 = vmatprep.subr.bf16.mxu0 0
    %663 = vmatpush1.bf16.msra.mxu0 %v506
    %664 = vmatprep.subr.bf16.mxu0 0
    %665 = vmatpush1.bf16.msra.mxu0 %v507
    %666 = vmatprep.subr.bf16.mxu0 0
    %667 = vmatpush1.bf16.msra.mxu0 %v508
    %668 = vmatprep.subr.bf16.mxu0 0
    %669 = vmatpush1.bf16.msra.mxu0 %v509
    %670 = vmatprep.subr.bf16.mxu0 0
    %671 = vmatpush1.bf16.msra.mxu0 %v510
    %672 = vmatprep.subr.bf16.mxu0 0
    %673 = vmatpush1.bf16.msra.mxu0 %v511
    %674 = vmatprep.subr.bf16.mxu0 0
    %675 = vmatpush1.bf16.msra.mxu0 %v512
    %676 = vmatprep.subr.bf16.mxu0 0
    %677 = vmatpush1.bf16.msra.mxu0 %v513
    %678 = vmatprep.subr.bf16.mxu0 0
    %679 = vmatpush1.bf16.msra.mxu0 %v514
    %680 = vmatprep.subr.bf16.mxu0 0
    %681 = vmatpush1.bf16.msra.mxu0 %v515
    %682 = vmatprep.subr.bf16.mxu0 0
    %683 = vmatpush1.bf16.msra.mxu0 %v516
    %684 = vmatprep.subr.bf16.mxu0 0
    %685 = vmatpush1.bf16.msra.mxu0 %v517
    %686 = vmatprep.mubr.bf16.mxu0 %v267
    %687 = vmatmul.mubr.bf16.gmra.mrb[0].mxu0 %v263
    %v688 = vpop.f32.mrb[0].mxu0
    %v689 = vadd.f32 %v648, %v688
    %v690 = vpop.f32.mrb[0].mxu0
    %v691 = vpop.f32.mrb[0].mxu0
    %v692 = vadd.f32 %v651, %v691
    %v693 = vpop.f32.mrb[0].mxu0
    %694 = vdwg.mxu0
    %695 = vmatprep.subr.bf16.mxu0 0
    %696 = vmatpush1.bf16.msra.mxu0 %v518
    %697 = vmatprep.subr.bf16.mxu0 0
    %698 = vmatpush1.bf16.msra.mxu0 0
    %699 = vmatprep.subr.bf16.mxu0 0
    %700 = vmatpush1.bf16.msra.mxu0 0
    %701 = vmatprep.subr.bf16.mxu0 0
    %702 = vmatpush1.bf16.msra.mxu0 0
    %703 = vmatprep.subr.bf16.mxu0 0
    %704 = vmatpush1.bf16.msra.mxu0 0
    %705 = vmatprep.subr.bf16.mxu0 0
    %706 = vmatpush1.bf16.msra.mxu0 0
    %707 = vmatprep.subr.bf16.mxu0 0
    %708 = vmatpush1.bf16.msra.mxu0 0
    %709 = vmatprep.subr.bf16.mxu0 0
    %710 = vmatpush1.bf16.msra.mxu0 0
    %711 = vmatprep.subr.bf16.mxu0 0
    %712 = vmatpush1.bf16.msra.mxu0 0
    %713 = vmatprep.subr.bf16.mxu0 0
    %714 = vmatpush1.bf16.msra.mxu0 0
    %715 = vmatprep.subr.bf16.mxu0 0
    %716 = vmatpush1.bf16.msra.mxu0 0
    %717 = vmatprep.subr.bf16.mxu0 0
    %718 = vmatpush1.bf16.msra.mxu0 0
    %719 = vmatprep.subr.bf16.mxu0 0
    %720 = vmatpush1.bf16.msra.mxu0 0
    %721 = vmatprep.subr.bf16.mxu0 0
    %722 = vmatpush1.bf16.msra.mxu0 0
    %723 = vmatprep.subr.bf16.mxu0 0
    %724 = vmatpush1.bf16.msra.mxu0 0
    %725 = vmatprep.subr.bf16.mxu0 0
    %726 = vmatpush1.bf16.msra.mxu0 0
    %727 = vmatprep.mubr.bf16.mxu0 0
    %728 = vmatmul.mubr.bf16.gmra.mrb[0].mxu0 %v570
    %v729 = vpop.f32.mrb[0].mxu0
    %v730 = vadd.f32 %v689, %v729
    %v731 = vpop.f32.mrb[0].mxu0
    %v732 = vpop.f32.mrb[0].mxu0
    %v733 = vadd.f32 %v692, %v732
    %v734 = vpop.f32.mrb[0].mxu0
    %735 = vdwg.mxu0
    %v736 = vmax.f32 %v730, 0.0
    %v737 = vmax.f32 %v733, 0.0
    %v738 = vpack.c.bf16 %v737, %v736
    %v739 = vld [vmem:[%s2] sm:$0xf]
    %v740 = vld [vmem:[%s2 + $0x4] sm:$0xf]
    %v741 = vld [vmem:[%s2 + $0x8] sm:$0x3]
    %v745 = vunpack.c.l.b16 %v739
    %v746 = vunpack.c.l.b16 %v740
    %v747 = vunpack.c.l.b16 %v741
    %v748 = vpack.c.b16 %v746, %v745
    %v749 = vpack.c.b16 %v747, %v747
    %vm751 = vcmask 162816
    %v753 = vsel %vm751, %v738, 0
    %vm755 = vcmask 1041408
    %v757 = vsel %vm755, %v749, 0
    %759 = vmatprep.subr.bf16.mxu0 0
    %760 = vmatpush1.bf16.msra.mxu0 %v748
    %761 = vmatprep.subr.bf16.mxu0 0
    %762 = vmatpush1.bf16.msra.mxu0 %v757
    %763 = vmatprep.subr.bf16.mxu0 0
    %764 = vmatpush1.bf16.msra.mxu0 0
    %765 = vmatprep.subr.bf16.mxu0 0
    %766 = vmatpush1.bf16.msra.mxu0 0
    %767 = vmatprep.subr.bf16.mxu0 0
    %768 = vmatpush1.bf16.msra.mxu0 0
    %769 = vmatprep.subr.bf16.mxu0 0
    %770 = vmatpush1.bf16.msra.mxu0 0
    %771 = vmatprep.subr.bf16.mxu0 0
    %772 = vmatpush1.bf16.msra.mxu0 0
    %773 = vmatprep.subr.bf16.mxu0 0
    %774 = vmatpush1.bf16.msra.mxu0 0
    %775 = vmatprep.subr.bf16.mxu0 0
    %776 = vmatpush1.bf16.msra.mxu0 0
    %777 = vmatprep.subr.bf16.mxu0 0
    %778 = vmatpush1.bf16.msra.mxu0 0
    %779 = vmatprep.subr.bf16.mxu0 0
    %780 = vmatpush1.bf16.msra.mxu0 0
    %781 = vmatprep.subr.bf16.mxu0 0
    %782 = vmatpush1.bf16.msra.mxu0 0
    %783 = vmatprep.subr.bf16.mxu0 0
    %784 = vmatpush1.bf16.msra.mxu0 0
    %785 = vmatprep.subr.bf16.mxu0 0
    %786 = vmatpush1.bf16.msra.mxu0 0
    %787 = vmatprep.subr.bf16.mxu0 0
    %788 = vmatpush1.bf16.msra.mxu0 0
    %789 = vmatprep.subr.bf16.mxu0 0
    %790 = vmatpush1.bf16.msra.mxu0 0
    %791 = vmatprep.mubr.bf16.mxu0 0
    %792 = vmatmul.mubr.bf16.gmra.mrb[0].mxu0 %v753
    %v793 = vpop.f32.mrb[0].mxu0
    %v794 = vadd.f32 0.0, %v793
    %v795 = vpop.f32.mrb[0].mxu0
    %v796 = vpop.f32.mrb[0].mxu0
    %v797 = vadd.f32 0.0, %v796
    %v798 = vpop.f32.mrb[0].mxu0
    %799 = vdwg.mxu0
    %v800 = vmax.f32 %v794, 0.0
    %v801 = vmax.f32 %v797, 0.0
    %v802 = vpack.c.bf16 %v801, %v800
    %v803 = vld [vmem:[%s3] sm:$0xf]
    %v804 = vld [vmem:[%s3 + $0x4] sm:$0xf]
    %v805 = vld [vmem:[%s3 + $0x8] sm:$0x3]
    %v809 = vunpack.c.l.b16 %v803
    %v810 = vunpack.c.l.b16 %v804
    %v811 = vunpack.c.l.b16 %v805
    %v812 = vpack.c.b16 %v810, %v809
    %v813 = vpack.c.b16 %v811, %v811
    %v816 = vsel %vm751, %v802, 0
    %v819 = vsel %vm755, %v813, 0
    %821 = vmatprep.subr.bf16.mxu0 0
    %822 = vmatpush1.bf16.msra.mxu0 %v812
    %823 = vmatprep.subr.bf16.mxu0 0
    %824 = vmatpush1.bf16.msra.mxu0 %v819
    %825 = vmatprep.subr.bf16.mxu0 0
    %826 = vmatpush1.bf16.msra.mxu0 0
    %827 = vmatprep.subr.bf16.mxu0 0
    %828 = vmatpush1.bf16.msra.mxu0 0
    %829 = vmatprep.subr.bf16.mxu0 0
    %830 = vmatpush1.bf16.msra.mxu0 0
    %831 = vmatprep.subr.bf16.mxu0 0
    %832 = vmatpush1.bf16.msra.mxu0 0
    %833 = vmatprep.subr.bf16.mxu0 0
    %834 = vmatpush1.bf16.msra.mxu0 0
    %835 = vmatprep.subr.bf16.mxu0 0
    %836 = vmatpush1.bf16.msra.mxu0 0
    %837 = vmatprep.subr.bf16.mxu0 0
    %838 = vmatpush1.bf16.msra.mxu0 0
    %839 = vmatprep.subr.bf16.mxu0 0
    %840 = vmatpush1.bf16.msra.mxu0 0
    %841 = vmatprep.subr.bf16.mxu0 0
    %842 = vmatpush1.bf16.msra.mxu0 0
    %843 = vmatprep.subr.bf16.mxu0 0
    %844 = vmatpush1.bf16.msra.mxu0 0
    %845 = vmatprep.subr.bf16.mxu0 0
    %846 = vmatpush1.bf16.msra.mxu0 0
    %847 = vmatprep.subr.bf16.mxu0 0
    %848 = vmatpush1.bf16.msra.mxu0 0
    %849 = vmatprep.subr.bf16.mxu0 0
    %850 = vmatpush1.bf16.msra.mxu0 0
    %851 = vmatprep.subr.bf16.mxu0 0
    %852 = vmatpush1.bf16.msra.mxu0 0
    %853 = vmatprep.mubr.bf16.mxu0 0
    %854 = vmatmul.mubr.bf16.gmra.mrb[0].mxu0 %v816
    %v855 = vpop.f32.mrb[0].mxu0
    %v856 = vadd.f32 0.0, %v855
    %v857 = vpop.f32.mrb[0].mxu0
    %v858 = vpop.f32.mrb[0].mxu0
    %v859 = vadd.f32 0.0, %v858
    %v860 = vpop.f32.mrb[0].mxu0
    %861 = vdwg.mxu0
    %vm862 = vcmask 80896
    %863 = vst.msk [vmem:[#allocation2] sm:$0xff] %vm862, %v856
    %864 = vst.msk [vmem:[#allocation2 + $0x8] sm:$0xff] %vm862, %v859
    // Predicated region
    $region18: #{gsp_forward.1} parent=1 // pred_check
      _
    $region19: #{gsp_forward.1} parent=1 // pred_check_branch
      %866 = sbr.rel (0) target = $region21
    $region20: #{gsp_forward.1} parent=1 // pred_region
      %s868 = ssub.s32 256, 32
      %869 = vsyncadd [#allocation3], %s868
      %s870 = sshll.u32 [#allocation2], 4
      %s871 = int_to_ptr.vmem [resolvable:$true] %s870
      %876 = dma.vmem_to_hbm [thread:$0]  %s871, 32, %s4, [#allocation3], 32, 32, 2
    $region21: #{gsp_forward.1} parent=1 // pred_fallthru
      _
    // Predicated region
    $region22: #{gsp_forward.1} parent=1 // pred_check
      _
    $region23: #{gsp_forward.1} parent=1 // pred_check_branch
      %878 = sbr.rel (0) target = $region25
    $region24: #{gsp_forward.1} parent=1 // pred_region
      %879 = dma.done [#allocation3], 256
    $region25: #{gsp_forward.1} parent=1 // pred_fallthru
      _
    %880 = vsyncpa [#allocation3], 1

</llo_original>
